<compile_context>
chip_gen: v5e
topology: v5e:2x2
jax: 0.10.0
libtpu: 0.0.40
codegen_flags: <defaults>
</compile_context>

<pallas_src>
import functools

import jax
import jax.numpy as jnp
import numpy as np
from jax import lax
from jax.experimental import pallas as pl
from jax.experimental.pallas import tpu as pltpu


# ---------------------------------------------------------------------------
# Generation-aware sizing
# ---------------------------------------------------------------------------

def _device_kind():
    try:
        return jax.devices()[0].device_kind.lower()
    except Exception:
        return ""


def _vmem_budget():
    """(per-stream buffer cap, resident-table cap, physical VMEM) in bytes."""
    kind = _device_kind()
    if "v7" in kind:
        # 64 MiB physical VMEM and 2 TensorCores each holding their own buffers.
        return 3 * 2**20, 6 * 2**20, 64 * 2**20
    if "v6" in kind:
        # 128 MiB physical / 32 MiB default scoped: big tiles are cheap.
        return 6 * 2**20, 8 * 2**20, 128 * 2**20
    if "v5e" in kind or "v5 lite" in kind or "v5lite" in kind:
        # 16 MiB default scoped limit: keep each live buffer modest.
        return int(2.5 * 2**20), 6 * 2**20, 128 * 2**20
    return 3 * 2**20, 6 * 2**20, 64 * 2**20


def _pick_tile(seq_len, dim, cap_bytes):
    """Largest token tile TS (multiple of 8, TS | seq_len) with TS*dim*4 <= cap."""
    cap_rows = max(8, cap_bytes // (dim * 4))
    for ts in (512, 256, 128, 64, 32, 16, 8):
        if ts <= cap_rows and seq_len % ts == 0:
            return ts
    return None  # no sublane-aligned tile divides seq_len


# ---------------------------------------------------------------------------
# Kernels
# ---------------------------------------------------------------------------

def _embed_vmem_kernel(ids_ref, pe_ref, emb_ref, out_ref, *, tile, seq_len):
    """Small-vocab path: table resident in VMEM, gather = dynamic row reads.

    ids_ref : (B*S,) int32 in SMEM (scalar prefetch)
    pe_ref  : (TS, D) f32 PE tile (constant across the inner batch axis)
    emb_ref : (V, D) f32 embedding table, resident VMEM block
    out_ref : (TS, D) f32 output tile
    """
    s = pl.program_id(0)
    b = pl.program_id(1)
    base = b * seq_len + s * tile

    def row(r, carry):
        tok = ids_ref[base + r]
        out_ref[pl.ds(r, 1), :] = (
            emb_ref[pl.ds(tok, 1), :] + pe_ref[pl.ds(r, 1), :]
        )
        return carry

    lax.fori_loop(0, tile, row, 0, unroll=8)


def _embed_hbm_kernel(ids_ref, pe_ref, emb_hbm, out_ref, gathered, sem,
                      *, tile, seq_len, batch):
    """Large-vocab path: HBM table, double-buffered per-row DMA gather.

    The prefetch only spans the inner (batch, "arbitrary") grid axis, so the
    cross-step scratch/semaphore state never crosses the "parallel" seq-tile
    axis and remains correct if that axis is sharded across TensorCores.

    gathered : (2*TS, D) f32 VMEM scratch (two slots)
    sem      : DMA semaphores, one per slot
    """
    s = pl.program_id(0)
    b = pl.program_id(1)
    slot = b % 2

    def issue(bb, slot_):
        # Issue all `tile` row DMAs for batch element bb of sequence-tile s.
        base = bb * seq_len + s * tile
        off = slot_ * tile

        def _start(r, carry):
            tok = ids_ref[base + r]
            pltpu.make_async_copy(
                emb_hbm.at[pl.ds(tok, 1), :],
                gathered.at[pl.ds(off + r, 1), :],
                sem.at[slot_],
            ).start()
            return carry

        lax.fori_loop(0, tile, _start, 0, unroll=8)

    # Prime the pipeline on the first (fast-axis) step of this sequence tile.
    @pl.when(b == 0)
    def _():
        issue(0, 0)

    # Prefetch the next batch element's rows into the other slot BEFORE waiting,
    # so their HBM latency hides under this tile's wait + add.
    @pl.when(b + 1 < batch)
    def _():
        issue(b + 1, 1 - slot)

    # One aggregate wait: a single (TS, D)-shaped descriptor consumes exactly the
    # byte count signalled by this slot's `tile` equally-sized (1, D) row copies.
    pltpu.make_async_copy(
        emb_hbm.at[pl.ds(0, tile), :],
        gathered.at[pl.ds(slot * tile, tile), :],
        sem.at[slot],
    ).wait()

    out_ref[...] = gathered[pl.ds(slot * tile, tile), :] + pe_ref[...]


# ---------------------------------------------------------------------------
# Wrapper
# ---------------------------------------------------------------------------

def embedding_layer(X, emb_table, pe_table):
    """X: (B, S) int token ids; emb_table: (V, D) f32; pe_table: (L, D) f32.

    Equivalent to nn.Embedding(X.long()) + sinusoidal positional encoding.
    """
    B, S = X.shape
    V, D = emb_table.shape
    assert S <= pe_table.shape[0], "sequence length exceeds PE table"

    ids = jnp.clip(X.reshape(-1).astype(jnp.int32), 0, V - 1)
    pe = pe_table[:S].astype(jnp.float32)            # (S, D) slab
    emb_table = emb_table.astype(jnp.float32)

    buf_cap, table_cap, phys_vmem = _vmem_budget()
    TS = _pick_tile(S, D, buf_cap)
    if TS is None:
        # No multiple-of-8 tile divides S: plain XLA fallback (keeps semantics).
        return jnp.take(emb_table, ids, axis=0).reshape(B, S, D) + pe[None]

    tiles_per_row = S // TS
    grid = (tiles_per_row, B)                        # batch is the fast axis

    # TODO(synk): for D < 128 the (TS, D) output blocks lower to masked partial
    # stores; a lane-folding ((B*S*D//128, 128)) layout would be lane-dense but
    # complicates the row gather, so it is not done here.
    pe_spec = pl.BlockSpec((TS, D), lambda s, b, ids: (s, 0))
    out_spec = pl.BlockSpec((TS, D), lambda s, b, ids: (b * tiles_per_row + s, 0))

    table_in_vmem = V * D * 4 <= table_cap
    if table_in_vmem:
        kernel = functools.partial(_embed_vmem_kernel, tile=TS, seq_len=S)
        table_spec = pl.BlockSpec((V, D), lambda s, b, ids: (0, 0))  # resident
        scratch = []
        vmem_needed = 2 * V * D * 4 + 4 * TS * D * 4
    else:
        kernel = functools.partial(_embed_hbm_kernel, tile=TS, seq_len=S, batch=B)
        table_spec = pl.BlockSpec(memory_space=pl.ANY)   # stays in HBM
        scratch = [pltpu.VMEM((2 * TS, D), jnp.float32),
                   pltpu.SemaphoreType.DMA((2,))]
        vmem_needed = 6 * TS * D * 4

    vmem_limit = int(min(max(2 * vmem_needed + (2 << 20), 16 << 20),
                         phys_vmem - (16 << 20)))

    grid_spec = pltpu.PrefetchScalarGridSpec(
        num_scalar_prefetch=1,
        grid=grid,
        in_specs=[pe_spec, table_spec],
        out_specs=out_spec,
        scratch_shapes=scratch,
    )

    flat = pl.pallas_call(
        kernel,
        out_shape=jax.ShapeDtypeStruct((B * S, D), jnp.float32),
        grid_spec=grid_spec,
        compiler_params=pltpu.CompilerParams(
            # seq-tile axis parallel (v7x 2-TC split), batch axis arbitrary
            # (keeps the cross-step gather double-buffer sequential per core).
            dimension_semantics=("parallel", "arbitrary"),
            vmem_limit_bytes=vmem_limit,
        ),
        cost_estimate=pl.CostEstimate(
            flops=B * S * D,
            transcendentals=0,
            bytes_accessed=(2 * B * S * D + S * D) * 4,  # gather + out + PE
        ),
    )(ids, pe, emb_table)

    return flat.reshape(B, S, D)


def make_sinusoidal_pe(max_seq_len, dim):
    # Standard "Attention Is All You Need" positional encoding.
    pos = np.arange(max_seq_len, dtype=np.float32)[:, None]      # (L, 1)
    i = np.arange(0, dim, 2, dtype=np.float32)[None, :]          # (1, D/2)
    div = np.exp(-np.log(10000.0) * i / dim)
    pe = np.zeros((max_seq_len, dim), dtype=np.float32)
    pe[:, 0::2] = np.sin(pos * div)
    pe[:, 1::2] = np.cos(pos * div)
    return jnp.asarray(pe)


if __name__ == "__main__":
    vocab_size, max_seq_len, dim = 50, 16, 32
    B, S = 2, 8

    key = jax.random.PRNGKey(0)
    k_emb, k_ids = jax.random.split(key)

    # nn.Embedding default init: N(0, 1)
    emb_table = jax.random.normal(k_emb, (vocab_size, dim), dtype=jnp.float32)
    pe_table = make_sinusoidal_pe(max_seq_len, dim)
    # TODO(synk): PositionalEncoding dropout is identity in eval mode; omitted.

    X = jax.random.randint(k_ids, (B, S), 0, vocab_size, dtype=jnp.int32)

    out = jax.block_until_ready(embedding_layer(X, emb_table, pe_table))

    # Pure-JAX reference check
    ref = emb_table[X] + pe_table[:S][None, :, :]
    np.testing.assert_allclose(np.asarray(out), np.asarray(ref), rtol=1e-6, atol=1e-6)

    print("KERNEL_OK")
</pallas_src>

<mosaic_0001>
module attributes {stable_mosaic.version = 11 : i64} {
  func.func @_embed_vmem_kernel(%arg0: i32, %arg1: i32, %arg2: memref<16xi32, #tpu.memory_space<smem>>, %arg3: memref<8x32xf32, #tpu.memory_space<vmem>>, %arg4: memref<50x32xf32, #tpu.memory_space<vmem>>, %arg5: memref<8x32xf32, #tpu.memory_space<vmem>>) attributes {dimension_semantics = [#tpu.dimension_semantics<parallel>, #tpu.dimension_semantics<arbitrary>], iteration_bounds = array<i64: 1, 2>, scalar_prefetch = 1 : i64, scratch_operands = 0 : i64, tpu.core_type = #tpu.core_type<tc>, window_params = [{transform_indices = @transform_0, window_bounds = array<i64: 8, 32>}, {pipeline_mode = #tpu.pipeline_mode<synchronous>, transform_indices = @transform_1, window_bounds = array<i64: 50, 32>}, {transform_indices = @transform_2, window_bounds = array<i64: 8, 32>}]} {
    %c8_i32 = arith.constant 8 : i32
    %0 = arith.muli %arg1, %c8_i32 : i32
    %c8_i32_0 = arith.constant 8 : i32
    %1 = arith.muli %arg0, %c8_i32_0 : i32
    %2 = arith.addi %0, %1 : i32
    %c0_i32 = arith.constant 0 : i32
    %3 = arith.addi %2, %c0_i32 : i32
    %4 = arith.index_cast %3 : i32 to index
    %5 = memref.load %arg2[%4] : memref<16xi32, #tpu.memory_space<smem>>
    %6 = arith.index_cast %5 : i32 to index
    %c0 = arith.constant 0 : index
    %7 = vector.load %arg4[%6, %c0] : memref<50x32xf32, #tpu.memory_space<vmem>>, vector<1x32xf32>
    %8 = arith.index_cast %c0_i32 : i32 to index
    %c0_1 = arith.constant 0 : index
    %9 = vector.load %arg3[%8, %c0_1] : memref<8x32xf32, #tpu.memory_space<vmem>>, vector<1x32xf32>
    %10 = arith.addf %7, %9 : vector<1x32xf32>
    %11 = arith.index_cast %c0_i32 : i32 to index
    %c0_2 = arith.constant 0 : index
    %12 = vector.load %arg5[%11, %c0_2] : memref<8x32xf32, #tpu.memory_space<vmem>>, vector<1x32xf32>
    tpu.vector_store %arg5[%11, %c0_2], %10 {strides = array<i32>} : memref<8x32xf32, #tpu.memory_space<vmem>>, vector<1x32xf32>,
    %c1_i32 = arith.constant 1 : i32
    %13 = arith.addi %2, %c1_i32 : i32
    %14 = arith.index_cast %13 : i32 to index
    %15 = memref.load %arg2[%14] : memref<16xi32, #tpu.memory_space<smem>>
    %16 = arith.index_cast %15 : i32 to index
    %c0_3 = arith.constant 0 : index
    %17 = vector.load %arg4[%16, %c0_3] : memref<50x32xf32, #tpu.memory_space<vmem>>, vector<1x32xf32>
    %18 = arith.index_cast %c1_i32 : i32 to index
    %c0_4 = arith.constant 0 : index
    %19 = vector.load %arg3[%18, %c0_4] : memref<8x32xf32, #tpu.memory_space<vmem>>, vector<1x32xf32>
    %20 = arith.addf %17, %19 : vector<1x32xf32>
    %21 = arith.index_cast %c1_i32 : i32 to index
    %c0_5 = arith.constant 0 : index
    %22 = vector.load %arg5[%21, %c0_5] : memref<8x32xf32, #tpu.memory_space<vmem>>, vector<1x32xf32>
    tpu.vector_store %arg5[%21, %c0_5], %20 {strides = array<i32>} : memref<8x32xf32, #tpu.memory_space<vmem>>, vector<1x32xf32>,
    %c2_i32 = arith.constant 2 : i32
    %23 = arith.addi %2, %c2_i32 : i32
    %24 = arith.index_cast %23 : i32 to index
    %25 = memref.load %arg2[%24] : memref<16xi32, #tpu.memory_space<smem>>
    %26 = arith.index_cast %25 : i32 to index
    %c0_6 = arith.constant 0 : index
    %27 = vector.load %arg4[%26, %c0_6] : memref<50x32xf32, #tpu.memory_space<vmem>>, vector<1x32xf32>
    %28 = arith.index_cast %c2_i32 : i32 to index
    %c0_7 = arith.constant 0 : index
    %29 = vector.load %arg3[%28, %c0_7] : memref<8x32xf32, #tpu.memory_space<vmem>>, vector<1x32xf32>
    %30 = arith.addf %27, %29 : vector<1x32xf32>
    %31 = arith.index_cast %c2_i32 : i32 to index
    %c0_8 = arith.constant 0 : index
    %32 = vector.load %arg5[%31, %c0_8] : memref<8x32xf32, #tpu.memory_space<vmem>>, vector<1x32xf32>
    tpu.vector_store %arg5[%31, %c0_8], %30 {strides = array<i32>} : memref<8x32xf32, #tpu.memory_space<vmem>>, vector<1x32xf32>,
    %c3_i32 = arith.constant 3 : i32
    %33 = arith.addi %2, %c3_i32 : i32
    %34 = arith.index_cast %33 : i32 to index
    %35 = memref.load %arg2[%34] : memref<16xi32, #tpu.memory_space<smem>>
    %36 = arith.index_cast %35 : i32 to index
    %c0_9 = arith.constant 0 : index
    %37 = vector.load %arg4[%36, %c0_9] : memref<50x32xf32, #tpu.memory_space<vmem>>, vector<1x32xf32>
    %38 = arith.index_cast %c3_i32 : i32 to index
    %c0_10 = arith.constant 0 : index
    %39 = vector.load %arg3[%38, %c0_10] : memref<8x32xf32, #tpu.memory_space<vmem>>, vector<1x32xf32>
    %40 = arith.addf %37, %39 : vector<1x32xf32>
    %41 = arith.index_cast %c3_i32 : i32 to index
    %c0_11 = arith.constant 0 : index
    %42 = vector.load %arg5[%41, %c0_11] : memref<8x32xf32, #tpu.memory_space<vmem>>, vector<1x32xf32>
    tpu.vector_store %arg5[%41, %c0_11], %40 {strides = array<i32>} : memref<8x32xf32, #tpu.memory_space<vmem>>, vector<1x32xf32>,
    %c4_i32 = arith.constant 4 : i32
    %43 = arith.addi %2, %c4_i32 : i32
    %44 = arith.index_cast %43 : i32 to index
    %45 = memref.load %arg2[%44] : memref<16xi32, #tpu.memory_space<smem>>
    %46 = arith.index_cast %45 : i32 to index
    %c0_12 = arith.constant 0 : index
    %47 = vector.load %arg4[%46, %c0_12] : memref<50x32xf32, #tpu.memory_space<vmem>>, vector<1x32xf32>
    %48 = arith.index_cast %c4_i32 : i32 to index
    %c0_13 = arith.constant 0 : index
    %49 = vector.load %arg3[%48, %c0_13] : memref<8x32xf32, #tpu.memory_space<vmem>>, vector<1x32xf32>
    %50 = arith.addf %47, %49 : vector<1x32xf32>
    %51 = arith.index_cast %c4_i32 : i32 to index
    %c0_14 = arith.constant 0 : index
    %52 = vector.load %arg5[%51, %c0_14] : memref<8x32xf32, #tpu.memory_space<vmem>>, vector<1x32xf32>
    tpu.vector_store %arg5[%51, %c0_14], %50 {strides = array<i32>} : memref<8x32xf32, #tpu.memory_space<vmem>>, vector<1x32xf32>,
    %c5_i32 = arith.constant 5 : i32
    %53 = arith.addi %2, %c5_i32 : i32
    %54 = arith.index_cast %53 : i32 to index
    %55 = memref.load %arg2[%54] : memref<16xi32, #tpu.memory_space<smem>>
    %56 = arith.index_cast %55 : i32 to index
    %c0_15 = arith.constant 0 : index
    %57 = vector.load %arg4[%56, %c0_15] : memref<50x32xf32, #tpu.memory_space<vmem>>, vector<1x32xf32>
    %58 = arith.index_cast %c5_i32 : i32 to index
    %c0_16 = arith.constant 0 : index
    %59 = vector.load %arg3[%58, %c0_16] : memref<8x32xf32, #tpu.memory_space<vmem>>, vector<1x32xf32>
    %60 = arith.addf %57, %59 : vector<1x32xf32>
    %61 = arith.index_cast %c5_i32 : i32 to index
    %c0_17 = arith.constant 0 : index
    %62 = vector.load %arg5[%61, %c0_17] : memref<8x32xf32, #tpu.memory_space<vmem>>, vector<1x32xf32>
    tpu.vector_store %arg5[%61, %c0_17], %60 {strides = array<i32>} : memref<8x32xf32, #tpu.memory_space<vmem>>, vector<1x32xf32>,
    %c6_i32 = arith.constant 6 : i32
    %63 = arith.addi %2, %c6_i32 : i32
    %64 = arith.index_cast %63 : i32 to index
    %65 = memref.load %arg2[%64] : memref<16xi32, #tpu.memory_space<smem>>
    %66 = arith.index_cast %65 : i32 to index
    %c0_18 = arith.constant 0 : index
    %67 = vector.load %arg4[%66, %c0_18] : memref<50x32xf32, #tpu.memory_space<vmem>>, vector<1x32xf32>
    %68 = arith.index_cast %c6_i32 : i32 to index
    %c0_19 = arith.constant 0 : index
    %69 = vector.load %arg3[%68, %c0_19] : memref<8x32xf32, #tpu.memory_space<vmem>>, vector<1x32xf32>
    %70 = arith.addf %67, %69 : vector<1x32xf32>
    %71 = arith.index_cast %c6_i32 : i32 to index
    %c0_20 = arith.constant 0 : index
    %72 = vector.load %arg5[%71, %c0_20] : memref<8x32xf32, #tpu.memory_space<vmem>>, vector<1x32xf32>
    tpu.vector_store %arg5[%71, %c0_20], %70 {strides = array<i32>} : memref<8x32xf32, #tpu.memory_space<vmem>>, vector<1x32xf32>,
    %c7_i32 = arith.constant 7 : i32
    %73 = arith.addi %2, %c7_i32 : i32
    %74 = arith.index_cast %73 : i32 to index
    %75 = memref.load %arg2[%74] : memref<16xi32, #tpu.memory_space<smem>>
    %76 = arith.index_cast %75 : i32 to index
    %c0_21 = arith.constant 0 : index
    %77 = vector.load %arg4[%76, %c0_21] : memref<50x32xf32, #tpu.memory_space<vmem>>, vector<1x32xf32>
    %78 = arith.index_cast %c7_i32 : i32 to index
    %c0_22 = arith.constant 0 : index
    %79 = vector.load %arg3[%78, %c0_22] : memref<8x32xf32, #tpu.memory_space<vmem>>, vector<1x32xf32>
    %80 = arith.addf %77, %79 : vector<1x32xf32>
    %81 = arith.index_cast %c7_i32 : i32 to index
    %c0_23 = arith.constant 0 : index
    %82 = vector.load %arg5[%81, %c0_23] : memref<8x32xf32, #tpu.memory_space<vmem>>, vector<1x32xf32>
    tpu.vector_store %arg5[%81, %c0_23], %80 {strides = array<i32>} : memref<8x32xf32, #tpu.memory_space<vmem>>, vector<1x32xf32>,
    %c8_i32_24 = arith.constant 8 : i32
    return
  }
  func.func @transform_0(%arg0: i32, %arg1: i32, %arg2: memref<16xi32, #tpu.memory_space<smem>>) -> (i32, i32) {
    %c0_i32 = arith.constant 0 : i32
    %c0_i32_0 = arith.constant 0 : i32
    return %arg0, %c0_i32 : i32, i32
  }
  func.func @transform_1(%arg0: i32, %arg1: i32, %arg2: memref<16xi32, #tpu.memory_space<smem>>) -> (i32, i32) {
    %c0_i32 = arith.constant 0 : i32
    %c0_i32_0 = arith.constant 0 : i32
    %c0_i32_1 = arith.constant 0 : i32
    return %c0_i32, %c0_i32_0 : i32, i32
  }
  func.func @transform_2(%arg0: i32, %arg1: i32, %arg2: memref<16xi32, #tpu.memory_space<smem>>) -> (i32, i32) {
    %c1_i32 = arith.constant 1 : i32
    %0 = arith.muli %arg1, %c1_i32 : i32
    %1 = arith.addi %0, %arg0 : i32
    %c0_i32 = arith.constant 0 : i32
    %c0_i32_0 = arith.constant 0 : i32
    return %1, %c0_i32 : i32, i32
  }
}

</mosaic_0001>

<llo_original>
// kernel: tpu_custom_call.1
$region0: #{tpu_custom_call.1}
  #allocation0 [shape = 'u32[]', space=smem, size = 0x4, offset = 0x4, fixed_abs, tag = 'smem constant byte address 0x4 - core index']
  #allocation1 [shape = 'u32[72,128]{1,0:T(1,128)}', space=vmem, size = 0x9000, scoped, tag = 'internal scratch']
  #allocation2 [shape = 's32[1]{0}', space=sflag, size = 0x4, scoped, tag = 'scoped memory for tpu_custom_call.1']
  #allocation3 [shape = 'u8[512]{0}', space=smem, size = 0x200, scoped, tag = 'prefetched SMEM operand 0']
  %s0 = inlined_call_operand.vmem [shape: s32[16], index: 0, kind: input, shape index: {}]
  %s1 = inlined_call_operand.vmem [shape: f32[8,32], index: 1, kind: input, shape index: {}]
  %s2 = inlined_call_operand.vmem [shape: f32[50,32], index: 2, kind: input, shape index: {}]
  %s3 = inlined_call_operand.hbm [shape: f32[16,32], index: 3, kind: output, shape index: {}]
  %s4 = sld [smem:[#allocation0]]
  $region41: #{tpu_custom_call.1} parent=0
    _
  %s6 = ssub.s32 1, %s4
  %s7 = scalar_select 0, %s6, %s4
  %s9 = sshll.u32 %s0, 4
  %s10 = int_to_ptr.vmem [resolvable:$true] %s9
  %12 = dma.vmem_to_smem %s10, 16, [#allocation3], [#allocation2]
  %14 = dma.done [#allocation2], 16
  %15 = sfence
  $region1: #{tpu_custom_call.1} parent=0
    #allocation4 [shape = 'u8[8192]{0}', space=vmem, size = 0x2000, scoped, tag = 'output window, operand 0']
    #allocation5 [shape = 's32[2]{0}', space=sflag, size = 0x8, scoped, tag = 'scoped memory for tpu_custom_call.1']
    %16 = vsyncpa [#allocation5], 0
    %s17 = scalar_lea.sflag [#allocation5], 1
    %18 = vsyncpa %s17, 0
    loop: start=0, step=1, limit=4
    $region2: #{tpu_custom_call.1} parent=1 // loop_pre_header
      _
    $region3: #{tpu_custom_call.1} parent=1 // loop_header
      %s20 = sphi 0, %s24
      %p21 = scmp.ge.s32.totalorder %s20, 4
      %s27 = sphi 0, %s39
      %s28 = sphi 0, %s35
      %s29 = sphi 0, %s27
      %s30 = sphi 0, %s28
      %s31 = sphi 0, %s29
      %s32 = sphi 0, %s30
      %s42 = sphi 0, %s44
      %s45 = sphi 0, %s42
      %s46 = sphi 0, %s45
      %s62 = sphi 0, %s46
      %s66 = sphi 0, %s66
      %s68 = sphi 0, %s66
      %s69 = sphi 0, %s68
      %s83 = sphi 0, %s69
      %s91 = sphi 0, %s93
      %s94 = sphi 0, %s91
      %s95 = sphi 0, %s94
      %s111 = sphi 0, %s95
    $region4: #{tpu_custom_call.1} parent=1 // loop_header_branch
      %23 = sbr.rel (%p21) target = $region8
    $region5: #{tpu_custom_call.1} parent=1 // loop_body
      %s25 = ssub.s32 %s20, 1
      %s26 = ssub.s32 %s20, 2
      %s33 = sadd.s32 1, %s28
      %p34 = scmp.ge.s32.totalorder %s33, 2
      %s35 = scalar_select %p34, 0, %s33
      %s36 = sadd.s32 1, %s27
      %s37 = scalar_select %p34, %s36, %s27
      %p38 = scmp.ge.s32.totalorder %s37, 1
      %s39 = scalar_select %p38, 0, %s37
      %s40 = ssub.s32 %s27, %s39
      %p41 = scmp.eq.s32.totalorder %s40, 0
      %s43 = sadd.s32 %s42, 1
      %s44 = scalar_select %p41, %s42, %s43
      %p47 = pneg %p41
      %p48 = scmp.eq.s32.totalorder %s20, 1
      %p49 = por %p47, %p48
      %p50 = scmp.ne.s32.totalorder %s42, %s45
      %p51 = scmp.eq.s32.totalorder %s20, 0
      %p52 = por %p50, %p51
      %p53 = scmp.ne.s32.totalorder %s42, %s45
      %p54 = scmp.eq.s32.totalorder %s25, 1
      %p55 = por %p53, %p54
      %p56 = scmp.ne.s32.totalorder %s45, %s46
      %p57 = scmp.eq.s32.totalorder %s25, 0
      %p58 = por %p56, %p57
      %p59 = scmp.ne.s32.totalorder %s45, %s46
      %p60 = scmp.eq.s32.totalorder %s26, 1
      %p61 = por %p59, %p60
      %p63 = scmp.ne.s32.totalorder %s46, %s62
      %p64 = scmp.eq.s32.totalorder %s26, 0
      %p65 = por %p63, %p64
      %s67 = sadd.s32 %s66, 1
      %p70 = scmp.eq.s32.totalorder %s20, 1
      %p71 = scmp.ne.s32.totalorder %s66, %s68
      %p72 = scmp.eq.s32.totalorder %s20, 0
      %p73 = por %p71, %p72
      %p74 = scmp.ne.s32.totalorder %s66, %s68
      %p75 = scmp.eq.s32.totalorder %s25, 1
      %p76 = por %p74, %p75
      %p77 = scmp.ne.s32.totalorder %s68, %s69
      %p78 = scmp.eq.s32.totalorder %s25, 0
      %p79 = por %p77, %p78
      %p80 = scmp.ne.s32.totalorder %s68, %s69
      %p81 = scmp.eq.s32.totalorder %s26, 1
      %p82 = por %p80, %p81
      %p84 = scmp.ne.s32.totalorder %s69, %s83
      %p85 = scmp.eq.s32.totalorder %s26, 0
      %p86 = por %p84, %p85
      %s87 = sadd.s32 %s28, %s27
      %s88 = sadd.s32 %s35, %s39
      %s89 = ssub.s32 %s87, %s88
      %p90 = scmp.eq.s32.totalorder %s89, 0
      %s92 = sadd.s32 %s91, 1
      %s93 = scalar_select %p90, %s91, %s92
      %p96 = pneg %p90
      %p97 = scmp.eq.s32.totalorder %s20, 1
      %p98 = por %p96, %p97
      %p99 = scmp.ne.s32.totalorder %s91, %s94
      %p100 = scmp.eq.s32.totalorder %s20, 0
      %p101 = por %p99, %p100
      %p102 = scmp.ne.s32.totalorder %s91, %s94
      %p103 = scmp.eq.s32.totalorder %s25, 1
      %p104 = por %p102, %p103
      %p105 = scmp.ne.s32.totalorder %s94, %s95
      %p106 = scmp.eq.s32.totalorder %s25, 0
      %p107 = por %p105, %p106
      %p108 = scmp.ne.s32.totalorder %s94, %s95
      %p109 = scmp.eq.s32.totalorder %s26, 1
      %p110 = por %p108, %p109
      %p112 = scmp.ne.s32.totalorder %s95, %s111
      %p113 = scmp.eq.s32.totalorder %s26, 0
      %p114 = por %p112, %p113
      %p115 = scmp.le.s32.totalorder 1, %s20
      %p116 = scmp.lt.s32.totalorder %s20, 3
      %p117 = pnand %p115, %p116
      %p118 = pneg %p117
      // Predicated region
      $region9: #{tpu_custom_call.1} parent=5 // pred_check
        _
      $region10: #{tpu_custom_call.1} parent=5 // pred_check_branch
        %120 = sbr.rel (%p117) target = $region12
      $region11: #{tpu_custom_call.1} parent=5 // pred_region
        %s121 = ssub.s32 %s20, 1
        // Predicated region
        $region13: #{tpu_custom_call.1} parent=11 // pred_check
          %p122 = pneg %p58
        $region14: #{tpu_custom_call.1} parent=11 // pred_check_branch
          %124 = sbr.rel (%p122) target = $region16
        $region15: #{tpu_custom_call.1} parent=11 // pred_region
          %p125 = scmp.lt.s32.totalorder %s29, 0
          %s126 = scalar_select %p125, %s29, 0
          %s127 = smul.addr %s126, 8
          %s128 = scalar_lea.vmem %s1, %s127
        $region16: #{tpu_custom_call.1} parent=11 // pred_fallthru
          _
        // Predicated region
        $region17: #{tpu_custom_call.1} parent=11 // pred_check
          %p129 = pneg %p79
        $region18: #{tpu_custom_call.1} parent=11 // pred_check_branch
          %131 = sbr.rel (%p129) target = $region20
        $region19: #{tpu_custom_call.1} parent=11 // pred_region
          _
        $region20: #{tpu_custom_call.1} parent=11 // pred_fallthru
          _
      $region12: #{tpu_custom_call.1} parent=5 // pred_fallthru
        _
      %p132 = scmp.lt.s32.totalorder %s20, 2
      // Predicated region
      $region21: #{tpu_custom_call.1} parent=5 // pred_check
        %p133 = pneg %p132
      $region22: #{tpu_custom_call.1} parent=5 // pred_check_branch
        %135 = sbr.rel (%p133) target = $region24
      $region23: #{tpu_custom_call.1} parent=5 // pred_region
        _
      $region24: #{tpu_custom_call.1} parent=5 // pred_fallthru
        _
      %p136 = scmp.le.s32.totalorder 1, %s20
      %p137 = scmp.lt.s32.totalorder %s20, 3
      %p138 = pnand %p136, %p137
      %p139 = pneg %p138
      // Predicated region
      $region25: #{tpu_custom_call.1} parent=5 // pred_check
        _
      $region26: #{tpu_custom_call.1} parent=5 // pred_check_branch
        %141 = sbr.rel (%p138) target = $region28
      $region27: #{tpu_custom_call.1} parent=5 // pred_region
        %s142 = ssub.s32 %s20, 1
        %p143 = scmp.lt.s32.totalorder %s29, 0
        %s144 = scalar_select %p143, %s29, 0
        %s145 = smul.addr %s144, 8
        %s146 = scalar_lea.vmem %s1, %s145
        %p147 = pneg %p58
        %p148 = pneg %p55
        %p149 = pneg %p79
        %p150 = pneg %p76
        %p151 = pneg %p107
        %p152 = pneg %p104
        %s153 = sand.u32 %s94, 1
        %s154 = scalar_lea.sflag [#allocation5], %s153
        %s155 = sand.u32 %s94, 1
        %s156 = smul.addr %s155, 8
        %s157 = scalar_lea.vmem [#allocation4], %s156
        %p158 = scmp.lt.s32.totalorder %s29, 0
        %s159 = scalar_select %p158, %s29, 0
        %s160 = smul.addr %s159, 8
        %s161 = scalar_lea.vmem %s1, %s160
        %s162 = sadd.s32 %s30, %s29
        %s163 = smul.u32 %s30, 8
        %s164 = smul.u32 %s29, 8
        %s165 = sadd.s32 %s163, %s164
        %s166 = sld [smem:[#allocation3 + %s165]]
        %s167 = scalar_lea.vmem %s2, %s166
        %v168 = vld [vmem:[%s167] sm:$0x1]
        %v169 = vld [vmem:[%s161] sm:$0x1]
        %v170 = vadd.f32 %v168, %v169
        %vm171 = vcmask 253952
        %172 = vst.msk [vmem:[%s157] sm:$0x1] %vm171, %v170
        %s173 = sadd.s32 %s165, 1
        %s174 = sld [smem:[#allocation3 + %s173]]
        %s175 = scalar_lea.vmem %s2, %s174
        %v176 = vld [vmem:[%s175] sm:$0x1]
        %v177 = vld [vmem:[%s161 + $0x1] sm:$0x1]
        %v178 = vadd.f32 %v176, %v177
        %179 = vst.msk [vmem:[%s157 + $0x1] sm:$0x1] %vm171, %v178
        %s180 = sadd.s32 %s165, 2
        %s181 = sld [smem:[#allocation3 + %s180]]
        %s182 = scalar_lea.vmem %s2, %s181
        %v183 = vld [vmem:[%s182] sm:$0x1]
        %v184 = vld [vmem:[%s161 + $0x2] sm:$0x1]
        %v185 = vadd.f32 %v183, %v184
        %186 = vst.msk [vmem:[%s157 + $0x2] sm:$0x1] %vm171, %v185
        %s187 = sadd.s32 %s165, 3
        %s188 = sld [smem:[#allocation3 + %s187]]
        %s189 = scalar_lea.vmem %s2, %s188
        %v190 = vld [vmem:[%s189] sm:$0x1]
        %v191 = vld [vmem:[%s161 + $0x3] sm:$0x1]
        %v192 = vadd.f32 %v190, %v191
        %193 = vst.msk [vmem:[%s157 + $0x3] sm:$0x1] %vm171, %v192
        %s194 = sadd.s32 %s165, 4
        %s195 = sld [smem:[#allocation3 + %s194]]
        %s196 = scalar_lea.vmem %s2, %s195
        %v197 = vld [vmem:[%s196] sm:$0x1]
        %v198 = vld [vmem:[%s161 + $0x4] sm:$0x1]
        %v199 = vadd.f32 %v197, %v198
        %200 = vst.msk [vmem:[%s157 + $0x4] sm:$0x1] %vm171, %v199
        %s201 = sadd.s32 %s165, 5
        %s202 = sld [smem:[#allocation3 + %s201]]
        %s203 = scalar_lea.vmem %s2, %s202
        %v204 = vld [vmem:[%s203] sm:$0x1]
        %v205 = vld [vmem:[%s161 + $0x5] sm:$0x1]
        %v206 = vadd.f32 %v204, %v205
        %207 = vst.msk [vmem:[%s157 + $0x5] sm:$0x1] %vm171, %v206
        %s208 = sadd.s32 %s165, 6
        %s209 = sld [smem:[#allocation3 + %s208]]
        %s210 = scalar_lea.vmem %s2, %s209
        %v211 = vld [vmem:[%s210] sm:$0x1]
        %v212 = vld [vmem:[%s161 + $0x6] sm:$0x1]
        %v213 = vadd.f32 %v211, %v212
        %214 = vst.msk [vmem:[%s157 + $0x6] sm:$0x1] %vm171, %v213
        %s215 = sadd.s32 %s165, 7
        %s216 = sld [smem:[#allocation3 + %s215]]
        %s217 = scalar_lea.vmem %s2, %s216
        %v218 = vld [vmem:[%s217] sm:$0x1]
        %v219 = vld [vmem:[%s161 + $0x7] sm:$0x1]
        %v220 = vadd.f32 %v218, %v219
        %221 = vst.msk [vmem:[%s157 + $0x7] sm:$0x1] %vm171, %v220
        %s222 = sand.u32 %s94, 1
        %s223 = scalar_lea.sflag [#allocation5], %s222
        %s224 = sand.u32 %s94, 1
        %s225 = smul.addr %s224, 8
        %s226 = scalar_lea.vmem [#allocation4], %s225
        // Predicated region
        $region29: #{tpu_custom_call.1} parent=27 // pred_check
          %p227 = pneg %p104
        $region30: #{tpu_custom_call.1} parent=27 // pred_check_branch
          %229 = sbr.rel (%p227) target = $region32
        $region31: #{tpu_custom_call.1} parent=27 // pred_region
          %s230 = sadd.s32 %s30, %s29
          %232 = vsyncadd %s223, 0
          %s233 = smul.addr %s230, 8
          %s234 = scalar_lea.hbm %s3, %s233
          %s236 = sshll.u32 %s226, 4
          %s237 = int_to_ptr.vmem [resolvable:$true] %s236
          %s238 = sshll.u32 %s234, 4
          %s239 = int_to_ptr.hbm [resolvable:$true] %s238
          %241 = dma.vmem_to_hbm [thread:$0]  %s237, 128, %s239, %s223
        $region32: #{tpu_custom_call.1} parent=27 // pred_fallthru
          _
      $region28: #{tpu_custom_call.1} parent=5 // pred_fallthru
        _
      %p242 = scmp.le.s32.totalorder 2, %s20
      // Predicated region
      $region33: #{tpu_custom_call.1} parent=5 // pred_check
        %p243 = pneg %p242
      $region34: #{tpu_custom_call.1} parent=5 // pred_check_branch
        %245 = sbr.rel (%p243) target = $region36
      $region35: #{tpu_custom_call.1} parent=5 // pred_region
        %s246 = ssub.s32 %s20, 2
        // Predicated region
        $region37: #{tpu_custom_call.1} parent=35 // pred_check
          %p247 = pneg %p110
        $region38: #{tpu_custom_call.1} parent=35 // pred_check_branch
          %249 = sbr.rel (%p247) target = $region40
        $region39: #{tpu_custom_call.1} parent=35 // pred_region
          %s250 = sand.u32 %s95, 1
          %s251 = scalar_lea.sflag [#allocation5], %s250
          %s252 = sand.u32 %s95, 1
          %s253 = smul.addr %s252, 8
          %s254 = scalar_lea.vmem [#allocation4], %s253
          %256 = dma.done %s251, 128
        $region40: #{tpu_custom_call.1} parent=35 // pred_fallthru
          _
      $region36: #{tpu_custom_call.1} parent=5 // pred_fallthru
        _
    $region6: #{tpu_custom_call.1} parent=1 // loop_footer
      %s24 = sadd.s32 1, %s20
    $region7: #{tpu_custom_call.1} parent=1 // loop_footer_branch
      %19 = sbr.rel target = $region3
    $region8: #{tpu_custom_call.1} parent=1 // loop_exit
      _
    %257 = vsyncpa [#allocation5], 1
    %s258 = scalar_lea.sflag [#allocation5], 1
    %259 = vsyncpa %s258, 1

</llo_original>
